<compile_context>
chip_gen: v7x
topology: tpu7x:2x2x1
jax: 0.10.0
libtpu: 0.0.40
codegen_flags: <defaults>
</compile_context>

<pallas_src>
import functools

import jax
import jax.numpy as jnp
from jax import lax
from jax.experimental import pallas as pl
from jax.experimental.pallas import tpu as pltpu


# ----------------------------- fused kernel: encoder + pool + project + loss head -----------------------------

def _fused_contrastive_kernel(ids_ref, mask_ref, emb_ref, ew_ref, eb_ref,
                              wcat_ref, bcat_ref, emo_ref, wcls_ref, bcls_ref,
                              hs_x_ref, ctx_ref, pe_x_ref, pred_ref, emova_ref, loss_ref,
                              cls_in_ref, *, B, S, V, H, inv_temp):
    M = 3 * B * S
    G = 3 * B

    # --- token embedding gather as one-hot matmul (toy vocab only) ---
    ids = ids_ref[...]                                                    # (M, 1) int32
    onehot = (ids == lax.broadcasted_iota(jnp.int32, (M, V), 1)).astype(jnp.float32)
    emb_rows = jnp.dot(onehot, emb_ref[...], preferred_element_type=jnp.float32)   # (M, H)

    # --- synthetic encoder: tanh(Linear(H, H)) -> hidden_states[-1] ---
    hs = jnp.tanh(jnp.dot(emb_rows, ew_ref[...], preferred_element_type=jnp.float32)
                  + eb_ref[...])                                          # (M, H)
    hs_x_ref[...] = hs[: B * S, :].astype(hs_x_ref.dtype)                 # x-branch hidden states

    # --- masked mean pooling as one MXU matmul ---
    # P[g, m] = mask[m] if column m belongs to sequence g, else 0 (block-diagonal pooling matrix).
    mrow = mask_ref[...]                                                  # (1, M) f32, lane-dense
    col = lax.broadcasted_iota(jnp.int32, (G, M), 1)
    low = lax.broadcasted_iota(jnp.int32, (G, M), 0) * S
    in_block = jnp.logical_and(col >= low, col < low + S)
    P = jnp.where(in_block, mrow, 0.0)                                    # (G, M)
    pooled_sum = jnp.dot(P, hs, preferred_element_type=jnp.float32)       # (G, H)
    denom = jnp.maximum(jnp.sum(P, axis=1, keepdims=True), 1e-9)          # torch clamp(min=1e-9)
    pooled = pooled_sum / denom                                           # exact divide (fidelity)

    # --- fused projections: [fc_content | fc_emotion] as one (H, 2H) matmul ---
    proj = (jnp.dot(pooled, wcat_ref[...], preferred_element_type=jnp.float32)
            + bcat_ref[...])                                              # (G, 2H)
    emo_all = proj[:, H:]                                                 # pooled_emotion [x; plus; minus]
    ctx_ref[...] = proj[:B, :H].astype(ctx_ref.dtype)                     # pooled_context_x
    pe_x = emo_all[:B, :]
    pe_x_ref[...] = pe_x.astype(pe_x_ref.dtype)                           # pooled_emotion_x

    # --- loss head epilogue (fused; no second launch) ---
    # F.normalize(p=2, dim=-1, eps=1e-12)  ==  x * rsqrt(max(sum(x^2), eps^2))
    inv_nrm = lax.rsqrt(jnp.maximum(jnp.sum(emo_all * emo_all, axis=-1, keepdims=True), 1e-24))
    pn = emo_all * inv_nrm
    q, keys = pn[:B, :], pn[B:, :]                                        # query, [positive; negative]
    logits = lax.dot_general(q, keys, (((1,), (1,)), ((), ())),
                             preferred_element_type=jnp.float32) * inv_temp   # (B, 2B)
    # Source loss is -mean(log_softmax) over ALL (B, 2B) logits; stable log-softmax form.
    mmax = jnp.max(logits, axis=-1, keepdims=True)
    lse = mmax + jnp.log(jnp.sum(jnp.exp(logits - mmax), axis=-1, keepdims=True))
    loss_e = -jnp.sum(logits - lse) / jnp.float32(B * 2 * B)
    contrastive_loss = 0.8 * loss_e

    # --- classifier: one matmul over stacked [pooled_emotion_x ; emo] ---
    cls_in_ref[pl.ds(0, B), :] = pe_x
    cls_in_ref[pl.ds(B, B), :] = emo_ref[...]
    cls_out = (jnp.dot(cls_in_ref[...], wcls_ref[...], preferred_element_type=jnp.float32)
               + bcls_ref[...])                                           # (2B, 128) lane-padded
    pred, emo_va = cls_out[:B, :], cls_out[B:, :]
    pred_ref[...] = pred.astype(pred_ref.dtype)
    emova_ref[...] = emo_va.astype(emova_ref.dtype)

    # (loss_V + loss_A + loss_D) / 3 == sum((pred - emo_va)^2 over first 3 cols) / (3B);
    # padded columns are identically zero so summing all 128 lanes is exact.
    diff = pred - emo_va
    classifier_loss = jnp.sum(diff * diff) / jnp.float32(3 * B)

    loss_ref[0, 0] = 0.3 * contrastive_loss + 0.7 * classifier_loss


def fused_forward_call(ids_all, mask_row, emo, params, temperature=0.07):
    V, H = params["emb"].shape
    S = params["_seq_len"]
    M = ids_all.shape[0]
    B = M // (3 * S)
    N = params["classifier"][0].shape[1]

    kern = functools.partial(_fused_contrastive_kernel, B=B, S=S, V=V, H=H,
                             inv_temp=1.0 / float(temperature))
    vmem = lambda: pl.BlockSpec(memory_space=pltpu.MemorySpace.VMEM)

    return pl.pallas_call(
        kern,
        out_shape=(
            jax.ShapeDtypeStruct((B * S, H), jnp.float32),   # hidden_states[-1] for x (flattened)
            jax.ShapeDtypeStruct((B, H), jnp.float32),       # pooled_context_x
            jax.ShapeDtypeStruct((B, H), jnp.float32),       # pooled_emotion_x
            jax.ShapeDtypeStruct((B, N), jnp.float32),       # predictions_va (lane-padded)
            jax.ShapeDtypeStruct((B, N), jnp.float32),       # emo_va (lane-padded)
            jax.ShapeDtypeStruct((1, 1), jnp.float32),       # total loss (SMEM scalar)
        ),
        in_specs=[vmem() for _ in range(10)],
        out_specs=(vmem(), vmem(), vmem(), vmem(), vmem(),
                   pl.BlockSpec(memory_space=pltpu.MemorySpace.SMEM)),
        scratch_shapes=[pltpu.VMEM((2 * B, H), jnp.float32)],   # classifier input staging
    )(ids_all, mask_row, params["emb"],
      params["enc"][0], params["enc"][1],
      params["proj_cat"][0], params["proj_cat"][1],
      emo, params["classifier"][0], params["classifier"][1])


# ----------------------------- Model (params + glue) -----------------------------

def init_params(key, vocab=64, hidden=128, seq_len=8, num_va=3, cls_pad=128):
    ks = jax.random.split(key, 5)

    def lin(k, din, dout):
        kw, kb = jax.random.split(k)
        w = jax.random.normal(kw, (din, dout), jnp.float32) * 0.02
        b = jax.random.normal(kb, (1, dout), jnp.float32) * 0.02
        return (w, b)

    # fc_content / fc_emotion fused into one (H, 2H) weight: one MXU push, 256-lane output.
    wc_c, bc_c = lin(ks[2], hidden, hidden)
    wc_e, bc_e = lin(ks[3], hidden, hidden)
    w_cat = jnp.concatenate([wc_c, wc_e], axis=1)
    b_cat = jnp.concatenate([bc_c, bc_e], axis=1)

    # Zero-pad the 3-wide classifier to 128 lanes: lane-dense in-kernel stores; padded columns
    # stay zero so results are exact.
    wcls, bcls = lin(ks[4], hidden, num_va)
    w_pad = jnp.zeros((hidden, cls_pad), jnp.float32).at[:, :num_va].set(wcls)
    b_pad = jnp.zeros((1, cls_pad), jnp.float32).at[:, :num_va].set(bcls)

    return dict(
        emb=jax.random.normal(ks[0], (vocab, hidden), jnp.float32) * 0.02,
        enc=lin(ks[1], hidden, hidden),
        proj_cat=(w_cat, b_cat),
        classifier=(w_pad, b_pad),
        _seq_len=seq_len,
        _num_va=num_va,
    )


def forward(params, input_tokens, input_plus_tokens, input_minus_tokens, emo,
            temperature=0.07):
    ids_x, mask_x = input_tokens
    ids_p, mask_p = input_plus_tokens
    ids_m, mask_m = input_minus_tokens
    B, S = ids_x.shape
    H = params["emb"].shape[1]
    num_va = params["_num_va"]

    # Batch the three branches into one slab (single encoder pass / single weight push).
    ids_all = jnp.concatenate([ids_x, ids_p, ids_m], axis=0).reshape(3 * B * S, 1)
    # Mask as a lane-dense (1, M) row (feeds the block-diagonal pooling matrix in-kernel).
    mask_row = jnp.concatenate([mask_x, mask_p, mask_m], axis=0
                               ).astype(jnp.float32).reshape(1, 3 * B * S)

    (hs_x2, pooled_context_x, pooled_emotion_x,
     pred_pad, emo_pad, loss) = fused_forward_call(ids_all, mask_row, emo, params,
                                                   temperature=temperature)

    hs_x = hs_x2.reshape(B, S, H)
    predictions_va = pred_pad[:, :num_va]
    emo_va = emo_pad[:, :num_va]
    total_loss = loss[0, 0]
    return total_loss, hs_x, pooled_context_x, pooled_emotion_x, predictions_va, emo_va


# ----------------------------- Driver -----------------------------

if __name__ == "__main__":
    B, S, H, VOCAB = 2, 8, 128, 64
    key = jax.random.PRNGKey(0)
    k_par, k_ids, k_idp, k_idm, k_emo = jax.random.split(key, 5)

    params = init_params(k_par, vocab=VOCAB, hidden=H, seq_len=S)

    def make_tokens(k, lengths):
        ids = jax.random.randint(k, (B, S), 0, VOCAB, dtype=jnp.int32)
        pos = jnp.arange(S)[None, :]
        mask = (pos < jnp.asarray(lengths)[:, None]).astype(jnp.float32)
        return ids, mask

    input_tokens = make_tokens(k_ids, [8, 5])
    input_plus_tokens = make_tokens(k_idp, [6, 8])
    input_minus_tokens = make_tokens(k_idm, [7, 4])
    emo = jax.random.normal(k_emo, (B, H), jnp.float32)

    outs = forward(params, input_tokens, input_plus_tokens, input_minus_tokens, emo)
    outs = jax.block_until_ready(outs)

    total_loss, hs_x, pooled_context_x, pooled_emotion_x, predictions_va, emo_va = outs
    assert hs_x.shape == (B, S, H)
    assert pooled_context_x.shape == (B, H)
    assert pooled_emotion_x.shape == (B, H)
    assert predictions_va.shape == (B, 3)
    assert emo_va.shape == (B, 3)
    assert jnp.isfinite(total_loss)
    print("KERNEL_OK")
</pallas_src>

<mosaic_0001>
module attributes {stable_mosaic.version = 11 : i64} {
  func.func @_fused_contrastive_kernel(%arg0: memref<48x1xi32, #tpu.memory_space<vmem>>, %arg1: memref<1x48xf32, #tpu.memory_space<vmem>>, %arg2: memref<64x128xf32, #tpu.memory_space<vmem>>, %arg3: memref<128x128xf32, #tpu.memory_space<vmem>>, %arg4: memref<1x128xf32, #tpu.memory_space<vmem>>, %arg5: memref<128x256xf32, #tpu.memory_space<vmem>>, %arg6: memref<1x256xf32, #tpu.memory_space<vmem>>, %arg7: memref<2x128xf32, #tpu.memory_space<vmem>>, %arg8: memref<128x128xf32, #tpu.memory_space<vmem>>, %arg9: memref<1x128xf32, #tpu.memory_space<vmem>>, %arg10: memref<16x128xf32, #tpu.memory_space<vmem>>, %arg11: memref<2x128xf32, #tpu.memory_space<vmem>>, %arg12: memref<2x128xf32, #tpu.memory_space<vmem>>, %arg13: memref<2x128xf32, #tpu.memory_space<vmem>>, %arg14: memref<2x128xf32, #tpu.memory_space<vmem>>, %arg15: memref<1x1xf32, #tpu.memory_space<smem>>, %arg16: memref<4x128xf32, #tpu.memory_space<vmem>>) attributes {dimension_semantics = [], scalar_prefetch = 0 : i64, scratch_operands = 1 : i64, tpu.core_type = #tpu.core_type<tc>} {
    %c0 = arith.constant 0 : index
    %c0_0 = arith.constant 0 : index
    %0 = vector.load %arg0[%c0, %c0_0] : memref<48x1xi32, #tpu.memory_space<vmem>>, vector<48x1xi32>
    %1 = tpu.iota {dimensions = array<i32: 1>} : vector<48x64xi32>
    %2 = vector.broadcast %0 : vector<48x1xi32> to vector<48x64xi32>
    %3 = arith.cmpi eq, %2, %1 : vector<48x64xi32>
    %4 = arith.extui %3 : vector<48x64xi1> to vector<48x64xi32>
    %5 = arith.sitofp %4 : vector<48x64xi32> to vector<48x64xf32>
    %c0_1 = arith.constant 0 : index
    %c0_2 = arith.constant 0 : index
    %6 = vector.load %arg2[%c0_1, %c0_2] : memref<64x128xf32, #tpu.memory_space<vmem>>, vector<64x128xf32>
    %cst = arith.constant dense<0.000000e+00> : vector<48x128xf32>
    %7 = tpu.matmul %5, %6, %cst {dimension_numbers = #tpu.dot_dimension_numbers<[1], [0], [0], [1], [0, 0, 1, 1], [], []>} : vector<48x64xf32>, vector<64x128xf32>, vector<48x128xf32> -> vector<48x128xf32>
    %c0_3 = arith.constant 0 : index
    %c0_4 = arith.constant 0 : index
    %8 = vector.load %arg3[%c0_3, %c0_4] : memref<128x128xf32, #tpu.memory_space<vmem>>, vector<128x128xf32>
    %cst_5 = arith.constant dense<0.000000e+00> : vector<48x128xf32>
    %9 = tpu.matmul %7, %8, %cst_5 {dimension_numbers = #tpu.dot_dimension_numbers<[1], [0], [0], [1], [0, 0, 1, 1], [], []>} : vector<48x128xf32>, vector<128x128xf32>, vector<48x128xf32> -> vector<48x128xf32>
    %c0_6 = arith.constant 0 : index
    %c0_7 = arith.constant 0 : index
    %10 = vector.load %arg4[%c0_6, %c0_7] : memref<1x128xf32, #tpu.memory_space<vmem>>, vector<1x128xf32>
    %11 = vector.broadcast %10 : vector<1x128xf32> to vector<48x128xf32>
    %12 = arith.addf %9, %11 : vector<48x128xf32>
    %13 = math.tanh %12 : vector<48x128xf32>
    %14 = vector.extract_strided_slice %13 {offsets = [0, 0], sizes = [16, 128], strides = [1, 1]} : vector<48x128xf32> to vector<16x128xf32>
    %c0_8 = arith.constant 0 : index
    %c0_9 = arith.constant 0 : index
    %15 = vector.load %arg10[%c0_8, %c0_9] : memref<16x128xf32, #tpu.memory_space<vmem>>, vector<16x128xf32>
    tpu.vector_store %arg10[%c0_8, %c0_9], %14 {strides = array<i32>} : memref<16x128xf32, #tpu.memory_space<vmem>>, vector<16x128xf32>,
    %c0_10 = arith.constant 0 : index
    %c0_11 = arith.constant 0 : index
    %16 = vector.load %arg1[%c0_10, %c0_11] : memref<1x48xf32, #tpu.memory_space<vmem>>, vector<1x48xf32>
    %17 = tpu.iota {dimensions = array<i32: 1>} : vector<6x48xi32>
    %18 = tpu.iota {dimensions = array<i32: 0>} : vector<6x48xi32>
    %c8_i32 = arith.constant 8 : i32
    %19 = vector.broadcast %c8_i32 : i32 to vector<6x48xi32>
    %20 = arith.muli %18, %19 : vector<6x48xi32>
    %21 = arith.cmpi sge, %17, %20 : vector<6x48xi32>
    %c8_i32_12 = arith.constant 8 : i32
    %22 = vector.broadcast %c8_i32_12 : i32 to vector<6x48xi32>
    %23 = arith.addi %20, %22 : vector<6x48xi32>
    %24 = arith.cmpi slt, %17, %23 : vector<6x48xi32>
    %25 = arith.andi %21, %24 : vector<6x48xi1>
    %cst_13 = arith.constant 0.000000e+00 : f32
    %26 = vector.shape_cast %16 : vector<1x48xf32> to vector<1x48xf32>
    %27 = vector.broadcast %26 : vector<1x48xf32> to vector<6x48xf32>
    %28 = vector.broadcast %cst_13 : f32 to vector<6x48xf32>
    %29 = arith.select %25, %27, %28 : vector<6x48xi1>, vector<6x48xf32>
    %cst_14 = arith.constant dense<0.000000e+00> : vector<6x128xf32>
    %30 = tpu.matmul %29, %13, %cst_14 {dimension_numbers = #tpu.dot_dimension_numbers<[1], [0], [0], [1], [0, 0, 1, 1], [], []>} : vector<6x48xf32>, vector<48x128xf32>, vector<6x128xf32> -> vector<6x128xf32>
    %cst_15 = arith.constant dense<0.000000e+00> : vector<6xf32>
    %31 = vector.multi_reduction <add>, %29, %cst_15 [1] : vector<6x48xf32> to vector<6xf32>
    %32 = vector.shape_cast %31 : vector<6xf32> to vector<6x1xf32>
    %cst_16 = arith.constant 9.99999971E-10 : f32
    %33 = vector.broadcast %cst_16 : f32 to vector<6x1xf32>
    %34 = arith.maximumf %32, %33 : vector<6x1xf32>
    %35 = vector.broadcast %34 : vector<6x1xf32> to vector<6x128xf32>
    %36 = arith.divf %30, %35 : vector<6x128xf32>
    %c0_17 = arith.constant 0 : index
    %c0_18 = arith.constant 0 : index
    %37 = vector.load %arg5[%c0_17, %c0_18] : memref<128x256xf32, #tpu.memory_space<vmem>>, vector<128x256xf32>
    %cst_19 = arith.constant dense<0.000000e+00> : vector<6x256xf32>
    %38 = tpu.matmul %36, %37, %cst_19 {dimension_numbers = #tpu.dot_dimension_numbers<[1], [0], [0], [1], [0, 0, 1, 1], [], []>} : vector<6x128xf32>, vector<128x256xf32>, vector<6x256xf32> -> vector<6x256xf32>
    %c0_20 = arith.constant 0 : index
    %c0_21 = arith.constant 0 : index
    %39 = vector.load %arg6[%c0_20, %c0_21] : memref<1x256xf32, #tpu.memory_space<vmem>>, vector<1x256xf32>
    %40 = vector.broadcast %39 : vector<1x256xf32> to vector<6x256xf32>
    %41 = arith.addf %38, %40 : vector<6x256xf32>
    %42 = vector.extract_strided_slice %41 {offsets = [0, 128], sizes = [6, 128], strides = [1, 1]} : vector<6x256xf32> to vector<6x128xf32>
    %43 = vector.extract_strided_slice %41 {offsets = [0, 0], sizes = [2, 128], strides = [1, 1]} : vector<6x256xf32> to vector<2x128xf32>
    %c0_22 = arith.constant 0 : index
    %c0_23 = arith.constant 0 : index
    %44 = vector.load %arg11[%c0_22, %c0_23] : memref<2x128xf32, #tpu.memory_space<vmem>>, vector<2x128xf32>
    tpu.vector_store %arg11[%c0_22, %c0_23], %43 {strides = array<i32>} : memref<2x128xf32, #tpu.memory_space<vmem>>, vector<2x128xf32>,
    %45 = vector.extract_strided_slice %42 {offsets = [0, 0], sizes = [2, 128], strides = [1, 1]} : vector<6x128xf32> to vector<2x128xf32>
    %c0_24 = arith.constant 0 : index
    %c0_25 = arith.constant 0 : index
    %46 = vector.load %arg12[%c0_24, %c0_25] : memref<2x128xf32, #tpu.memory_space<vmem>>, vector<2x128xf32>
    tpu.vector_store %arg12[%c0_24, %c0_25], %45 {strides = array<i32>} : memref<2x128xf32, #tpu.memory_space<vmem>>, vector<2x128xf32>,
    %47 = arith.mulf %42, %42 : vector<6x128xf32>
    %cst_26 = arith.constant dense<0.000000e+00> : vector<6xf32>
    %48 = vector.multi_reduction <add>, %47, %cst_26 [1] : vector<6x128xf32> to vector<6xf32>
    %49 = vector.shape_cast %48 : vector<6xf32> to vector<6x1xf32>
    %cst_27 = arith.constant 1.000000e-24 : f32
    %50 = vector.broadcast %cst_27 : f32 to vector<6x1xf32>
    %51 = arith.maximumf %49, %50 : vector<6x1xf32>
    %52 = math.rsqrt %51 : vector<6x1xf32>
    %53 = vector.broadcast %52 : vector<6x1xf32> to vector<6x128xf32>
    %54 = arith.mulf %42, %53 : vector<6x128xf32>
    %55 = vector.extract_strided_slice %54 {offsets = [0, 0], sizes = [2, 128], strides = [1, 1]} : vector<6x128xf32> to vector<2x128xf32>
    %56 = vector.extract_strided_slice %54 {offsets = [2, 0], sizes = [4, 128], strides = [1, 1]} : vector<6x128xf32> to vector<4x128xf32>
    %cst_28 = arith.constant dense<0.000000e+00> : vector<2x4xf32>
    %57 = tpu.matmul %55, %56, %cst_28 {dimension_numbers = #tpu.dot_dimension_numbers<[1], [1], [0], [0], [0, 0, 1, 0], [], []>} : vector<2x128xf32>, vector<4x128xf32>, vector<2x4xf32> -> vector<2x4xf32>
    %cst_29 = arith.constant 14.2857141 : f32
    %58 = vector.broadcast %cst_29 : f32 to vector<2x4xf32>
    %59 = arith.mulf %57, %58 : vector<2x4xf32>
    %cst_30 = arith.constant dense<0xFF800000> : vector<2xf32>
    %60 = vector.multi_reduction <maximumf>, %59, %cst_30 [1] : vector<2x4xf32> to vector<2xf32>
    %61 = vector.shape_cast %60 : vector<2xf32> to vector<2x1xf32>
    %62 = vector.broadcast %61 : vector<2x1xf32> to vector<2x4xf32>
    %63 = arith.subf %59, %62 : vector<2x4xf32>
    %64 = math.exp %63 : vector<2x4xf32>
    %cst_31 = arith.constant dense<0.000000e+00> : vector<2xf32>
    %65 = vector.multi_reduction <add>, %64, %cst_31 [1] : vector<2x4xf32> to vector<2xf32>
    %66 = vector.shape_cast %65 : vector<2xf32> to vector<2x1xf32>
    %67 = math.log %66 : vector<2x1xf32>
    %68 = arith.addf %61, %67 : vector<2x1xf32>
    %69 = vector.broadcast %68 : vector<2x1xf32> to vector<2x4xf32>
    %70 = arith.subf %59, %69 : vector<2x4xf32>
    %71 = vector.shape_cast %70 : vector<2x4xf32> to vector<1x2x4xf32>
    %cst_32 = arith.constant dense<0.000000e+00> : vector<1xf32>
    %72 = vector.multi_reduction <add>, %71, %cst_32 [1, 2] : vector<1x2x4xf32> to vector<1xf32>
    %73 = vector.shape_cast %72 : vector<1xf32> to vector<1x1x1xf32>
    %74 = vector.extract %73[0, 0, 0] : f32 from vector<1x1x1xf32>
    %cst_33 = arith.constant 0.000000e+00 : f32
    %75 = arith.subf %cst_33, %74 : f32
    %cst_34 = arith.constant 8.000000e+00 : f32
    %76 = arith.divf %75, %cst_34 : f32
    %cst_35 = arith.constant 8.000000e-01 : f32
    %77 = arith.mulf %cst_35, %76 : f32
    %c0_36 = arith.constant 0 : index
    %c0_37 = arith.constant 0 : index
    %78 = vector.load %arg16[%c0_36, %c0_37] : memref<4x128xf32, #tpu.memory_space<vmem>>, vector<2x128xf32>
    tpu.vector_store %arg16[%c0_36, %c0_37], %45 {strides = array<i32>} : memref<4x128xf32, #tpu.memory_space<vmem>>, vector<2x128xf32>,
    %c0_38 = arith.constant 0 : index
    %c0_39 = arith.constant 0 : index
    %79 = vector.load %arg7[%c0_38, %c0_39] : memref<2x128xf32, #tpu.memory_space<vmem>>, vector<2x128xf32>
    %c2 = arith.constant 2 : index
    %c0_40 = arith.constant 0 : index
    %80 = vector.load %arg16[%c2, %c0_40] : memref<4x128xf32, #tpu.memory_space<vmem>>, vector<2x128xf32>
    tpu.vector_store %arg16[%c2, %c0_40], %79 {strides = array<i32>} : memref<4x128xf32, #tpu.memory_space<vmem>>, vector<2x128xf32>,
    %c0_41 = arith.constant 0 : index
    %c0_42 = arith.constant 0 : index
    %81 = vector.load %arg16[%c0_41, %c0_42] : memref<4x128xf32, #tpu.memory_space<vmem>>, vector<4x128xf32>
    %c0_43 = arith.constant 0 : index
    %c0_44 = arith.constant 0 : index
    %82 = vector.load %arg8[%c0_43, %c0_44] : memref<128x128xf32, #tpu.memory_space<vmem>>, vector<128x128xf32>
    %cst_45 = arith.constant dense<0.000000e+00> : vector<4x128xf32>
    %83 = tpu.matmul %81, %82, %cst_45 {dimension_numbers = #tpu.dot_dimension_numbers<[1], [0], [0], [1], [0, 0, 1, 1], [], []>} : vector<4x128xf32>, vector<128x128xf32>, vector<4x128xf32> -> vector<4x128xf32>
    %c0_46 = arith.constant 0 : index
    %c0_47 = arith.constant 0 : index
    %84 = vector.load %arg9[%c0_46, %c0_47] : memref<1x128xf32, #tpu.memory_space<vmem>>, vector<1x128xf32>
    %85 = vector.broadcast %84 : vector<1x128xf32> to vector<4x128xf32>
    %86 = arith.addf %83, %85 : vector<4x128xf32>
    %87 = vector.extract_strided_slice %86 {offsets = [0, 0], sizes = [2, 128], strides = [1, 1]} : vector<4x128xf32> to vector<2x128xf32>
    %88 = vector.extract_strided_slice %86 {offsets = [2, 0], sizes = [2, 128], strides = [1, 1]} : vector<4x128xf32> to vector<2x128xf32>
    %c0_48 = arith.constant 0 : index
    %c0_49 = arith.constant 0 : index
    %89 = vector.load %arg13[%c0_48, %c0_49] : memref<2x128xf32, #tpu.memory_space<vmem>>, vector<2x128xf32>
    tpu.vector_store %arg13[%c0_48, %c0_49], %87 {strides = array<i32>} : memref<2x128xf32, #tpu.memory_space<vmem>>, vector<2x128xf32>,
    %c0_50 = arith.constant 0 : index
    %c0_51 = arith.constant 0 : index
    %90 = vector.load %arg14[%c0_50, %c0_51] : memref<2x128xf32, #tpu.memory_space<vmem>>, vector<2x128xf32>
    tpu.vector_store %arg14[%c0_50, %c0_51], %88 {strides = array<i32>} : memref<2x128xf32, #tpu.memory_space<vmem>>, vector<2x128xf32>,
    %91 = arith.subf %87, %88 : vector<2x128xf32>
    %92 = arith.mulf %91, %91 : vector<2x128xf32>
    %93 = vector.shape_cast %92 : vector<2x128xf32> to vector<1x2x128xf32>
    %cst_52 = arith.constant dense<0.000000e+00> : vector<1xf32>
    %94 = vector.multi_reduction <add>, %93, %cst_52 [1, 2] : vector<1x2x128xf32> to vector<1xf32>
    %95 = vector.shape_cast %94 : vector<1xf32> to vector<1x1x1xf32>
    %96 = vector.extract %95[0, 0, 0] : f32 from vector<1x1x1xf32>
    %cst_53 = arith.constant 6.000000e+00 : f32
    %97 = arith.divf %96, %cst_53 : f32
    %cst_54 = arith.constant 3.000000e-01 : f32
    %98 = arith.mulf %cst_54, %77 : f32
    %cst_55 = arith.constant 0.699999988 : f32
    %99 = arith.mulf %cst_55, %97 : f32
    %100 = arith.addf %98, %99 : f32
    %c0_56 = arith.constant 0 : index
    %c0_57 = arith.constant 0 : index
    %101 = memref.load %arg15[%c0_56, %c0_57] : memref<1x1xf32, #tpu.memory_space<smem>>
    memref.store %100, %arg15[%c0_56, %c0_57] : memref<1x1xf32, #tpu.memory_space<smem>>
    return
  }
}

</mosaic_0001>

<llo_original>
// kernel: tpu_custom_call.1
$region0: #{tpu_custom_call.1}
  #allocation0 [shape = 'u32[]', space=smem, size = 0x4, offset = 0x4, fixed_abs, tag = 'smem constant byte address 0x4 - core index']
  #allocation1 [shape = 'u32[144,128]{1,0:T(1,128)}', space=vmem, size = 0x12000, scoped, tag = 'internal scratch']
  #allocation2 [shape = 'f32[4,128]{1,0:T(4,128)}', space=vmem, size = 0x800, scoped, tag = 'scratch operand']
  %s0 = inlined_call_operand.vmem [shape: s32[48,1], index: 0, kind: input, shape index: {}]
  %s1 = inlined_call_operand.vmem [shape: f32[1,48], index: 1, kind: input, shape index: {}]
  %s2 = inlined_call_operand.hbm [shape: f32[64,128], index: 2, kind: input, shape index: {}]
  %s3 = inlined_call_operand.hbm [shape: f32[128,128], index: 3, kind: input, shape index: {}]
  %s4 = inlined_call_operand.vmem [shape: f32[1,128], index: 4, kind: input, shape index: {}]
  %s5 = inlined_call_operand.hbm [shape: f32[128,256], index: 5, kind: input, shape index: {}]
  %s6 = inlined_call_operand.vmem [shape: f32[1,256], index: 6, kind: input, shape index: {}]
  %s7 = inlined_call_operand.vmem [shape: f32[2,128], index: 7, kind: input, shape index: {}]
  %s8 = inlined_call_operand.hbm [shape: f32[128,128], index: 8, kind: input, shape index: {}]
  %s9 = inlined_call_operand.vmem [shape: f32[1,128], index: 9, kind: input, shape index: {}]
  %s10 = inlined_call_operand.hbm [shape: f32[16,128], index: 10, kind: output, shape index: {0}]
  %s11 = inlined_call_operand.hbm [shape: f32[2,128], index: 11, kind: output, shape index: {1}]
  %s12 = inlined_call_operand.hbm [shape: f32[2,128], index: 12, kind: output, shape index: {2}]
  %s13 = inlined_call_operand.hbm [shape: f32[2,128], index: 13, kind: output, shape index: {3}]
  %s14 = inlined_call_operand.hbm [shape: f32[2,128], index: 14, kind: output, shape index: {4}]
  %s15 = inlined_call_operand.hbm [shape: f32[1,1], index: 15, kind: output, shape index: {5}]
  %16 = xla_tuple %s10, %s11, %s12, %s13, %s14, %s15
  %s17 = sld [smem:[#allocation0]]
  $region106: #{tpu_custom_call.1} parent=0
    _
  %s19 = ssub.s32 1, %s17
  %s20 = scalar_select 0, %s19, %s17
  $region1: #{tpu_custom_call.1} parent=0
    #allocation3 [shape = 'u8[32768]{0}', space=vmem, size = 0x8000, scoped, tag = 'input window, operand 2, single buffered']
    #allocation4 [shape = 's32[1]{0}', space=sflag, size = 0x4, scoped, tag = 'scoped memory for tpu_custom_call.1']
    #allocation5 [shape = 's32[1]{0}', space=sflag, size = 0x4, scoped, tag = 'scoped memory for tpu_custom_call.1']
    #allocation6 [shape = 's32[1]{0}', space=sflag, size = 0x4, scoped, tag = 'scoped memory for tpu_custom_call.1']
    #allocation7 [shape = 'u8[65536]{0}', space=vmem, size = 0x10000, scoped, tag = 'input window, operand 3, single buffered']
    #allocation8 [shape = 's32[1]{0}', space=sflag, size = 0x4, scoped, tag = 'scoped memory for tpu_custom_call.1']
    #allocation9 [shape = 'u8[131072]{0}', space=vmem, size = 0x20000, scoped, tag = 'input window, operand 5, single buffered']
    #allocation10 [shape = 'u8[65536]{0}', space=vmem, size = 0x10000, scoped, tag = 'input window, operand 8, single buffered']
    #allocation11 [shape = 's32[1]{0}', space=sflag, size = 0x4, scoped, tag = 'scoped memory for tpu_custom_call.1']
    #allocation12 [shape = 'u8[8192]{0}', space=vmem, size = 0x2000, scoped, tag = 'output window, operand 0, single buffered']
    #allocation13 [shape = 'u8[1024]{0}', space=vmem, size = 0x400, scoped, tag = 'output window, operand 1, single buffered']
    #allocation14 [shape = 's32[1]{0}', space=sflag, size = 0x4, scoped, tag = 'scoped memory for tpu_custom_call.1']
    #allocation15 [shape = 'u8[1024]{0}', space=vmem, size = 0x400, scoped, tag = 'output window, operand 2, single buffered']
    #allocation16 [shape = 'u8[1024]{0}', space=vmem, size = 0x400, scoped, tag = 'output window, operand 3, single buffered']
    #allocation17 [shape = 's32[1]{0}', space=sflag, size = 0x4, scoped, tag = 'scoped memory for tpu_custom_call.1']
    #allocation18 [shape = 'u8[1024]{0}', space=vmem, size = 0x400, scoped, tag = 'output window, operand 4, single buffered']
    #allocation19 [shape = 'u8[512]{0}', space=smem, size = 0x200, scoped, tag = 'output window, operand 5, single buffered']
    %21 = vsyncpa [#allocation4], 0
    %22 = vsyncpa [#allocation8], 0
    %23 = vsyncpa [#allocation11], 0
    %24 = vsyncpa [#allocation5], 0
    %25 = vsyncpa [#allocation14], 0
    %26 = vsyncpa [#allocation17], 0
    %27 = vsyncpa [#allocation6], 0
    // Predicated region
    $region2: #{tpu_custom_call.1} parent=1 // pred_check
      _
    $region3: #{tpu_custom_call.1} parent=1 // pred_check_branch
      %29 = sbr.rel (0) target = $region5
    $region4: #{tpu_custom_call.1} parent=1 // pred_region
      _
    $region5: #{tpu_custom_call.1} parent=1 // pred_fallthru
      _
    // Predicated region
    $region6: #{tpu_custom_call.1} parent=1 // pred_check
      _
    $region7: #{tpu_custom_call.1} parent=1 // pred_check_branch
      %31 = sbr.rel (0) target = $region9
    $region8: #{tpu_custom_call.1} parent=1 // pred_region
      _
    $region9: #{tpu_custom_call.1} parent=1 // pred_fallthru
      _
    // Predicated region
    $region10: #{tpu_custom_call.1} parent=1 // pred_check
      _
    $region11: #{tpu_custom_call.1} parent=1 // pred_check_branch
      %33 = sbr.rel (0) target = $region13
    $region12: #{tpu_custom_call.1} parent=1 // pred_region
      %s35 = ssub.s32 1024, 1024
      %36 = vsyncadd [#allocation4], %s35
      %s37 = sshll.u32 [#allocation3], 4
      %s38 = int_to_ptr.vmem [resolvable:$true] %s37
      %43 = dma.hbm_to_vmem [thread:$0]  %s2, 1024, %s38, [#allocation4], 128, 128, 8
    $region13: #{tpu_custom_call.1} parent=1 // pred_fallthru
      _
    // Predicated region
    $region14: #{tpu_custom_call.1} parent=1 // pred_check
      _
    $region15: #{tpu_custom_call.1} parent=1 // pred_check_branch
      %45 = sbr.rel (0) target = $region17
    $region16: #{tpu_custom_call.1} parent=1 // pred_region
      %s47 = ssub.s32 2048, 2048
      %48 = vsyncadd [#allocation8], %s47
      %s49 = sshll.u32 [#allocation7], 4
      %s50 = int_to_ptr.vmem [resolvable:$true] %s49
      %55 = dma.hbm_to_vmem [thread:$0]  %s3, 2048, %s50, [#allocation8], 128, 128, 8
    $region17: #{tpu_custom_call.1} parent=1 // pred_fallthru
      _
    // Predicated region
    $region18: #{tpu_custom_call.1} parent=1 // pred_check
      _
    $region19: #{tpu_custom_call.1} parent=1 // pred_check_branch
      %57 = sbr.rel (0) target = $region21
    $region20: #{tpu_custom_call.1} parent=1 // pred_region
      _
    $region21: #{tpu_custom_call.1} parent=1 // pred_fallthru
      _
    // Predicated region
    $region22: #{tpu_custom_call.1} parent=1 // pred_check
      _
    $region23: #{tpu_custom_call.1} parent=1 // pred_check_branch
      %59 = sbr.rel (0) target = $region25
    $region24: #{tpu_custom_call.1} parent=1 // pred_region
      %s61 = ssub.s32 4096, 4096
      %62 = vsyncadd [#allocation8], %s61
      %s63 = sshll.u32 [#allocation9], 4
      %s64 = int_to_ptr.vmem [resolvable:$true] %s63
      %69 = dma.hbm_to_vmem [thread:$0]  %s5, 4096, %s64, [#allocation8], 256, 256, 16
    $region25: #{tpu_custom_call.1} parent=1 // pred_fallthru
      _
    // Predicated region
    $region26: #{tpu_custom_call.1} parent=1 // pred_check
      _
    $region27: #{tpu_custom_call.1} parent=1 // pred_check_branch
      %71 = sbr.rel (0) target = $region29
    $region28: #{tpu_custom_call.1} parent=1 // pred_region
      _
    $region29: #{tpu_custom_call.1} parent=1 // pred_fallthru
      _
    // Predicated region
    $region30: #{tpu_custom_call.1} parent=1 // pred_check
      _
    $region31: #{tpu_custom_call.1} parent=1 // pred_check_branch
      %73 = sbr.rel (0) target = $region33
    $region32: #{tpu_custom_call.1} parent=1 // pred_region
      _
    $region33: #{tpu_custom_call.1} parent=1 // pred_fallthru
      _
    // Predicated region
    $region34: #{tpu_custom_call.1} parent=1 // pred_check
      _
    $region35: #{tpu_custom_call.1} parent=1 // pred_check_branch
      %75 = sbr.rel (0) target = $region37
    $region36: #{tpu_custom_call.1} parent=1 // pred_region
      %s77 = ssub.s32 2048, 2048
      %78 = vsyncadd [#allocation11], %s77
      %s79 = sshll.u32 [#allocation10], 4
      %s80 = int_to_ptr.vmem [resolvable:$true] %s79
      %85 = dma.hbm_to_vmem [thread:$0]  %s8, 2048, %s80, [#allocation11], 128, 128, 8
    $region37: #{tpu_custom_call.1} parent=1 // pred_fallthru
      _
    // Predicated region
    $region38: #{tpu_custom_call.1} parent=1 // pred_check
      _
    $region39: #{tpu_custom_call.1} parent=1 // pred_check_branch
      %87 = sbr.rel (0) target = $region41
    $region40: #{tpu_custom_call.1} parent=1 // pred_region
      _
    $region41: #{tpu_custom_call.1} parent=1 // pred_fallthru
      _
    // Predicated region
    $region42: #{tpu_custom_call.1} parent=1 // pred_check
      _
    $region43: #{tpu_custom_call.1} parent=1 // pred_check_branch
      %89 = sbr.rel (0) target = $region45
    $region44: #{tpu_custom_call.1} parent=1 // pred_region
      %90 = dma.done [#allocation4], 1024
    $region45: #{tpu_custom_call.1} parent=1 // pred_fallthru
      _
    // Predicated region
    $region46: #{tpu_custom_call.1} parent=1 // pred_check
      _
    $region47: #{tpu_custom_call.1} parent=1 // pred_check_branch
      %92 = sbr.rel (0) target = $region49
    $region48: #{tpu_custom_call.1} parent=1 // pred_region
      %93 = dma.done [#allocation8], 2048
    $region49: #{tpu_custom_call.1} parent=1 // pred_fallthru
      _
    // Predicated region
    $region50: #{tpu_custom_call.1} parent=1 // pred_check
      _
    $region51: #{tpu_custom_call.1} parent=1 // pred_check_branch
      %95 = sbr.rel (0) target = $region53
    $region52: #{tpu_custom_call.1} parent=1 // pred_region
      %96 = dma.done [#allocation8], 4096
    $region53: #{tpu_custom_call.1} parent=1 // pred_fallthru
      _
    // Predicated region
    $region54: #{tpu_custom_call.1} parent=1 // pred_check
      _
    $region55: #{tpu_custom_call.1} parent=1 // pred_check_branch
      %98 = sbr.rel (0) target = $region57
    $region56: #{tpu_custom_call.1} parent=1 // pred_region
      %99 = dma.done [#allocation11], 2048
    $region57: #{tpu_custom_call.1} parent=1 // pred_fallthru
      _
    %v100 = vld [vmem:[%s0] sm:$0xff]
    %v101 = vld [vmem:[%s0 + $0x8] sm:$0xff]
    %v102 = vld [vmem:[%s0 + $0x10] sm:$0xff]
    %v103 = vld [vmem:[%s0 + $0x18] sm:$0xff]
    %v104 = vld [vmem:[%s0 + $0x20] sm:$0xff]
    %v105 = vld [vmem:[%s0 + $0x28] sm:$0xff]
    %v106 = vlaneseq
    %v107 = vand.u32 %v106, 127
    %108 = vset.pattern.permute.xlu0 0
    %109 = vperm.xlu0 %108, %v100
    %v110 = vpop.permute.xlu0 %109
    %111 = vset.pattern.permute.xlu0 0
    %112 = vperm.xlu0 %111, %v101
    %v113 = vpop.permute.xlu0 %112
    %114 = vset.pattern.permute.xlu0 0
    %115 = vperm.xlu0 %114, %v102
    %v116 = vpop.permute.xlu0 %115
    %117 = vset.pattern.permute.xlu0 0
    %118 = vperm.xlu0 %117, %v103
    %v119 = vpop.permute.xlu0 %118
    %120 = vset.pattern.permute.xlu0 0
    %121 = vperm.xlu0 %120, %v104
    %v122 = vpop.permute.xlu0 %121
    %123 = vset.pattern.permute.xlu0 0
    %124 = vperm.xlu0 %123, %v105
    %v125 = vpop.permute.xlu0 %124
    %vm126 = vcmp.eq.s32.totalorder %v110, %v107
    %vm127 = vcmp.eq.s32.totalorder %v113, %v107
    %vm128 = vcmp.eq.s32.totalorder %v116, %v107
    %vm129 = vcmp.eq.s32.totalorder %v119, %v107
    %vm130 = vcmp.eq.s32.totalorder %v122, %v107
    %vm131 = vcmp.eq.s32.totalorder %v125, %v107
    %v132 = vsel %vm126, 1, 0
    %v133 = vsel %vm127, 1, 0
    %v134 = vsel %vm128, 1, 0
    %v135 = vsel %vm129, 1, 0
    %v136 = vsel %vm130, 1, 0
    %v137 = vsel %vm131, 1, 0
    %v138 = vcvt.s32.f32 %v132
    %v139 = vcvt.s32.f32 %v133
    %v140 = vcvt.s32.f32 %v134
    %v141 = vcvt.s32.f32 %v135
    %v142 = vcvt.s32.f32 %v136
    %v143 = vcvt.s32.f32 %v137
    %v144 = vld [vmem:[#allocation3] sm:$0xff]
    %v145 = vld [vmem:[#allocation3 + $0x8] sm:$0xff]
    %v146 = vld [vmem:[#allocation3 + $0x10] sm:$0xff]
    %v147 = vld [vmem:[#allocation3 + $0x18] sm:$0xff]
    %v148 = vld [vmem:[#allocation3 + $0x20] sm:$0xff]
    %v149 = vld [vmem:[#allocation3 + $0x28] sm:$0xff]
    %v150 = vld [vmem:[#allocation3 + $0x30] sm:$0xff]
    %v151 = vld [vmem:[#allocation3 + $0x38] sm:$0xff]
    %vm152 = vcmask 523264
    %v154 = vsel %vm152, %v138, 0
    %v157 = vsel %vm152, %v139, 0
    %v160 = vsel %vm152, %v140, 0
    %v163 = vsel %vm152, %v141, 0
    %v166 = vsel %vm152, %v142, 0
    %v169 = vsel %vm152, %v143, 0
    %171 = vmatprep.subr.mxu0 0.0
    %172 = vmatpush1.msra.mxu0 %v144
    %173 = vmatprep.subr.mxu0 0.0
    %174 = vmatpush1.msra.mxu0 %v145
    %175 = vmatprep.subr.mxu0 0.0
    %176 = vmatpush1.msra.mxu0 %v146
    %177 = vmatprep.subr.mxu0 0.0
    %178 = vmatpush1.msra.mxu0 %v147
    %179 = vmatprep.subr.mxu0 0.0
    %180 = vmatpush1.msra.mxu0 %v148
    %181 = vmatprep.subr.mxu0 0.0
    %182 = vmatpush1.msra.mxu0 %v149
    %183 = vmatprep.subr.mxu0 0.0
    %184 = vmatpush1.msra.mxu0 %v150
    %185 = vmatprep.subr.mxu0 0.0
    %186 = vmatpush1.msra.mxu0 %v151
    %187 = vmatprep.subr.mxu0 0.0
    %188 = vmatpush1.msra.mxu0 0.0
    %189 = vmatprep.subr.mxu0 0.0
    %190 = vmatpush1.msra.mxu0 0.0
    %191 = vmatprep.subr.mxu0 0.0
    %192 = vmatpush1.msra.mxu0 0.0
    %193 = vmatprep.subr.mxu0 0.0
    %194 = vmatpush1.msra.mxu0 0.0
    %195 = vmatprep.subr.mxu0 0.0
    %196 = vmatpush1.msra.mxu0 0.0
    %197 = vmatprep.subr.mxu0 0.0
    %198 = vmatpush1.msra.mxu0 0.0
    %199 = vmatprep.subr.mxu0 0.0
    %200 = vmatpush1.msra.mxu0 0.0
    %201 = vmatprep.subr.mxu0 0.0
    %202 = vmatpush1.msra.mxu0 0.0
    %203 = vmatprep.subr.mxu0 0.0
    %204 = vmatpush1.msra.mxu0 0.0
    %205 = vmatprep.subr.mxu0 0.0
    %206 = vmatpush1.msra.mxu0 0.0
    %207 = vmatprep.subr.mxu0 0.0
    %208 = vmatpush1.msra.mxu0 0.0
    %209 = vmatprep.subr.mxu0 0.0
    %210 = vmatpush1.msra.mxu0 0.0
    %211 = vmatprep.subr.mxu0 0.0
    %212 = vmatpush1.msra.mxu0 0.0
    %213 = vmatprep.subr.mxu0 0.0
    %214 = vmatpush1.msra.mxu0 0.0
    %215 = vmatprep.subr.mxu0 0.0
    %216 = vmatpush1.msra.mxu0 0.0
    %217 = vmatprep.subr.mxu0 0.0
    %218 = vmatpush1.msra.mxu0 0.0
    %219 = vmatprep.subr.mxu0 0.0
    %220 = vmatpush1.msra.mxu0 0.0
    %221 = vmatprep.subr.mxu0 0.0
    %222 = vmatpush1.msra.mxu0 0.0
    %223 = vmatprep.subr.mxu0 0.0
    %224 = vmatpush1.msra.mxu0 0.0
    %225 = vmatprep.subr.mxu0 0.0
    %226 = vmatpush1.msra.mxu0 0.0
    %227 = vmatprep.subr.mxu0 0.0
    %228 = vmatpush1.msra.mxu0 0.0
    %229 = vmatprep.subr.mxu0 0.0
    %230 = vmatpush1.msra.mxu0 0.0
    %231 = vmatprep.subr.mxu0 0.0
    %232 = vmatpush1.msra.mxu0 0.0
    %233 = vmatprep.subr.mxu0 0.0
    %234 = vmatpush1.msra.mxu0 0.0
    %235 = vmatprep.mubr.f32.mxu0 0.0
    %236 = vmatmul.mubr.f32.gmra.mrb[0].mxu0 %v154
    %v237 = vpop.f32.mrb[0].mxu0
    %v238 = vadd.f32 0.0, %v237
    %v239 = vpop.f32.mrb[0].mxu0
    %240 = vmatprep.mubr.f32.mxu0 0.0
    %241 = vmatmul.mubr.f32.gmra.mrb[0].mxu0 %v157
    %v242 = vpop.f32.mrb[0].mxu0
    %v243 = vadd.f32 0.0, %v242
    %v244 = vpop.f32.mrb[0].mxu0
    %245 = vmatprep.mubr.f32.mxu0 0.0
    %246 = vmatmul.mubr.f32.gmra.mrb[0].mxu0 %v160
    %v247 = vpop.f32.mrb[0].mxu0
    %v248 = vadd.f32 0.0, %v247
    %v249 = vpop.f32.mrb[0].mxu0
    %250 = vmatprep.mubr.f32.mxu0 0.0
    %251 = vmatmul.mubr.f32.gmra.mrb[0].mxu0 %v163
    %v252 = vpop.f32.mrb[0].mxu0
    %v253 = vadd.f32 0.0, %v252
    %v254 = vpop.f32.mrb[0].mxu0
    %255 = vmatprep.mubr.f32.mxu0 0.0
    %256 = vmatmul.mubr.f32.gmra.mrb[0].mxu0 %v166
    %v257 = vpop.f32.mrb[0].mxu0
    %v258 = vadd.f32 0.0, %v257
    %v259 = vpop.f32.mrb[0].mxu0
    %260 = vmatprep.mubr.f32.mxu0 0.0
    %261 = vmatmul.mubr.f32.gmra.mrb[0].mxu0 %v169
    %v262 = vpop.f32.mrb[0].mxu0
    %v263 = vadd.f32 0.0, %v262
    %v264 = vpop.f32.mrb[0].mxu0
    %265 = vdwg.mxu0
    %v266 = vld [vmem:[#allocation7] sm:$0xff]
    %v267 = vld [vmem:[#allocation7 + $0x8] sm:$0xff]
    %v268 = vld [vmem:[#allocation7 + $0x10] sm:$0xff]
    %v269 = vld [vmem:[#allocation7 + $0x18] sm:$0xff]
    %v270 = vld [vmem:[#allocation7 + $0x20] sm:$0xff]
    %v271 = vld [vmem:[#allocation7 + $0x28] sm:$0xff]
    %v272 = vld [vmem:[#allocation7 + $0x30] sm:$0xff]
    %v273 = vld [vmem:[#allocation7 + $0x38] sm:$0xff]
    %v274 = vld [vmem:[#allocation7 + $0x40] sm:$0xff]
    %v275 = vld [vmem:[#allocation7 + $0x48] sm:$0xff]
    %v276 = vld [vmem:[#allocation7 + $0x50] sm:$0xff]
    %v277 = vld [vmem:[#allocation7 + $0x58] sm:$0xff]
    %v278 = vld [vmem:[#allocation7 + $0x60] sm:$0xff]
    %v279 = vld [vmem:[#allocation7 + $0x68] sm:$0xff]
    %v280 = vld [vmem:[#allocation7 + $0x70] sm:$0xff]
    %v281 = vld [vmem:[#allocation7 + $0x78] sm:$0xff]
    %v282 = vld [vmem:[%s4] sm:$0x1]
    %v284 = vlaneseq
    %v285 = vshrl.u32 %v284, 7
    %v286 = vsub.s32 0, %v285
    %v287 = vrot.slane %v282, %v286
    %289 = vmatprep.subr.mxu0 0.0
    %290 = vmatpush1.msra.mxu0 %v266
    %291 = vmatprep.subr.mxu0 0.0
    %292 = vmatpush1.msra.mxu0 %v267
    %293 = vmatprep.subr.mxu0 0.0
    %294 = vmatpush1.msra.mxu0 %v268
    %295 = vmatprep.subr.mxu0 0.0
    %296 = vmatpush1.msra.mxu0 %v269
    %297 = vmatprep.subr.mxu0 0.0
    %298 = vmatpush1.msra.mxu0 %v270
    %299 = vmatprep.subr.mxu0 0.0
    %300 = vmatpush1.msra.mxu0 %v271
    %301 = vmatprep.subr.mxu0 0.0
    %302 = vmatpush1.msra.mxu0 %v272
    %303 = vmatprep.subr.mxu0 0.0
    %304 = vmatpush1.msra.mxu0 %v273
    %305 = vmatprep.subr.mxu0 0.0
    %306 = vmatpush1.msra.mxu0 %v274
    %307 = vmatprep.subr.mxu0 0.0
    %308 = vmatpush1.msra.mxu0 %v275
    %309 = vmatprep.subr.mxu0 0.0
    %310 = vmatpush1.msra.mxu0 %v276
    %311 = vmatprep.subr.mxu0 0.0
    %312 = vmatpush1.msra.mxu0 %v277
    %313 = vmatprep.subr.mxu0 0.0
    %314 = vmatpush1.msra.mxu0 %v278
    %315 = vmatprep.subr.mxu0 0.0
    %316 = vmatpush1.msra.mxu0 %v279
    %317 = vmatprep.subr.mxu0 0.0
    %318 = vmatpush1.msra.mxu0 %v280
    %319 = vmatprep.subr.mxu0 0.0
    %320 = vmatpush1.msra.mxu0 %v281
    %321 = vmatprep.subr.mxu0 0.0
    %322 = vmatpush1.msra.mxu0 0.0
    %323 = vmatprep.subr.mxu0 0.0
    %324 = vmatpush1.msra.mxu0 0.0
    %325 = vmatprep.subr.mxu0 0.0
    %326 = vmatpush1.msra.mxu0 0.0
    %327 = vmatprep.subr.mxu0 0.0
    %328 = vmatpush1.msra.mxu0 0.0
    %329 = vmatprep.subr.mxu0 0.0
    %330 = vmatpush1.msra.mxu0 0.0
    %331 = vmatprep.subr.mxu0 0.0
    %332 = vmatpush1.msra.mxu0 0.0
    %333 = vmatprep.subr.mxu0 0.0
    %334 = vmatpush1.msra.mxu0 0.0
    %335 = vmatprep.subr.mxu0 0.0
    %336 = vmatpush1.msra.mxu0 0.0
    %337 = vmatprep.subr.mxu0 0.0
    %338 = vmatpush1.msra.mxu0 0.0
    %339 = vmatprep.subr.mxu0 0.0
    %340 = vmatpush1.msra.mxu0 0.0
    %341 = vmatprep.subr.mxu0 0.0
    %342 = vmatpush1.msra.mxu0 0.0
    %343 = vmatprep.subr.mxu0 0.0
    %344 = vmatpush1.msra.mxu0 0.0
    %345 = vmatprep.subr.mxu0 0.0
    %346 = vmatpush1.msra.mxu0 0.0
    %347 = vmatprep.subr.mxu0 0.0
    %348 = vmatpush1.msra.mxu0 0.0
    %349 = vmatprep.subr.mxu0 0.0
    %350 = vmatpush1.msra.mxu0 0.0
    %351 = vmatprep.subr.mxu0 0.0
    %352 = vmatpush1.msra.mxu0 0.0
    %353 = vmatprep.mubr.f32.mxu0 0.0
    %354 = vmatmul.mubr.f32.gmra.mrb[0].mxu0 %v238
    %v355 = vpop.f32.mrb[0].mxu0
    %v356 = vadd.f32 %v287, %v355
    %v357 = vpop.f32.mrb[0].mxu0
    %358 = vmatprep.mubr.f32.mxu0 0.0
    %359 = vmatmul.mubr.f32.gmra.mrb[0].mxu0 %v243
    %v360 = vpop.f32.mrb[0].mxu0
    %v361 = vadd.f32 %v287, %v360
    %v362 = vpop.f32.mrb[0].mxu0
    %363 = vmatprep.mubr.f32.mxu0 0.0
    %364 = vmatmul.mubr.f32.gmra.mrb[0].mxu0 %v248
    %v365 = vpop.f32.mrb[0].mxu0
    %v366 = vadd.f32 %v287, %v365
    %v367 = vpop.f32.mrb[0].mxu0
    %368 = vmatprep.mubr.f32.mxu0 0.0
    %369 = vmatmul.mubr.f32.gmra.mrb[0].mxu0 %v253
    %v370 = vpop.f32.mrb[0].mxu0
    %v371 = vadd.f32 %v287, %v370
    %v372 = vpop.f32.mrb[0].mxu0
    %373 = vmatprep.mubr.f32.mxu0 0.0
    %374 = vmatmul.mubr.f32.gmra.mrb[0].mxu0 %v258
    %v375 = vpop.f32.mrb[0].mxu0
    %v376 = vadd.f32 %v287, %v375
    %v377 = vpop.f32.mrb[0].mxu0
    %378 = vmatprep.mubr.f32.mxu0 0.0
    %379 = vmatmul.mubr.f32.gmra.mrb[0].mxu0 %v263
    %v380 = vpop.f32.mrb[0].mxu0
    %v381 = vadd.f32 %v287, %v380
    %v382 = vpop.f32.mrb[0].mxu0
    %383 = vdwg.mxu0
    %v384 = vtanh.pop %v356
    %v385 = vtanh.pop %v361
    %v386 = vtanh.pop %v366
    %v387 = vtanh.pop %v371
    %v388 = vtanh.pop %v376
    %v389 = vtanh.pop %v381
    %390 = vst [vmem:[#allocation12] sm:$0xff] %v384
    %391 = vst [vmem:[#allocation12 + $0x8] sm:$0xff] %v385
    %v392 = vld [vmem:[%s1] sm:$0x1]
    %v393 = vlaneseq
    %v394 = vshrl.u32 %v393, 7
    %v395 = vmul.u32 %v394, 8
    %vm396 = vcmp.ge.s32.totalorder %v107, %v395
    %v397 = vadd.s32 %v395, 8
    %vm398 = vcmp.lt.s32.totalorder %v107, %v397
    %vm399 = vmand %vm396, %vm398
    %v401 = vlaneseq
    %v402 = vshrl.u32 %v401, 7
    %v403 = vsub.s32 0, %v402
    %v404 = vrot.slane %v392, %v403
    %v406 = vsel %vm399, %v404, 0.0
    %vm407 = vcmask 392192
    %v409 = vsel %vm407, %v406, 0
    %411 = vmatprep.subr.mxu0 0.0
    %412 = vmatpush1.msra.mxu0 %v384
    %413 = vmatprep.subr.mxu0 0.0
    %414 = vmatpush1.msra.mxu0 %v385
    %415 = vmatprep.subr.mxu0 0.0
    %416 = vmatpush1.msra.mxu0 %v386
    %417 = vmatprep.subr.mxu0 0.0
    %418 = vmatpush1.msra.mxu0 %v387
    %419 = vmatprep.subr.mxu0 0.0
    %420 = vmatpush1.msra.mxu0 %v388
    %421 = vmatprep.subr.mxu0 0.0
    %422 = vmatpush1.msra.mxu0 %v389
    %423 = vmatprep.subr.mxu0 0.0
    %424 = vmatpush1.msra.mxu0 0.0
    %425 = vmatprep.subr.mxu0 0.0
    %426 = vmatpush1.msra.mxu0 0.0
    %427 = vmatprep.subr.mxu0 0.0
    %428 = vmatpush1.msra.mxu0 0.0
    %429 = vmatprep.subr.mxu0 0.0
    %430 = vmatpush1.msra.mxu0 0.0
    %431 = vmatprep.subr.mxu0 0.0
    %432 = vmatpush1.msra.mxu0 0.0
    %433 = vmatprep.subr.mxu0 0.0
    %434 = vmatpush1.msra.mxu0 0.0
    %435 = vmatprep.subr.mxu0 0.0
    %436 = vmatpush1.msra.mxu0 0.0
    %437 = vmatprep.subr.mxu0 0.0
    %438 = vmatpush1.msra.mxu0 0.0
    %439 = vmatprep.subr.mxu0 0.0
    %440 = vmatpush1.msra.mxu0 0.0
    %441 = vmatprep.subr.mxu0 0.0
    %442 = vmatpush1.msra.mxu0 0.0
    %443 = vmatprep.subr.mxu0 0.0
    %444 = vmatpush1.msra.mxu0 0.0
    %445 = vmatprep.subr.mxu0 0.0
    %446 = vmatpush1.msra.mxu0 0.0
    %447 = vmatprep.subr.mxu0 0.0
    %448 = vmatpush1.msra.mxu0 0.0
    %449 = vmatprep.subr.mxu0 0.0
    %450 = vmatpush1.msra.mxu0 0.0
    %451 = vmatprep.subr.mxu0 0.0
    %452 = vmatpush1.msra.mxu0 0.0
    %453 = vmatprep.subr.mxu0 0.0
    %454 = vmatpush1.msra.mxu0 0.0
    %455 = vmatprep.subr.mxu0 0.0
    %456 = vmatpush1.msra.mxu0 0.0
    %457 = vmatprep.subr.mxu0 0.0
    %458 = vmatpush1.msra.mxu0 0.0
    %459 = vmatprep.subr.mxu0 0.0
    %460 = vmatpush1.msra.mxu0 0.0
    %461 = vmatprep.subr.mxu0 0.0
    %462 = vmatpush1.msra.mxu0 0.0
    %463 = vmatprep.subr.mxu0 0.0
    %464 = vmatpush1.msra.mxu0 0.0
    %465 = vmatprep.subr.mxu0 0.0
    %466 = vmatpush1.msra.mxu0 0.0
    %467 = vmatprep.subr.mxu0 0.0
    %468 = vmatpush1.msra.mxu0 0.0
    %469 = vmatprep.subr.mxu0 0.0
    %470 = vmatpush1.msra.mxu0 0.0
    %471 = vmatprep.subr.mxu0 0.0
    %472 = vmatpush1.msra.mxu0 0.0
    %473 = vmatprep.subr.mxu0 0.0
    %474 = vmatpush1.msra.mxu0 0.0
    %475 = vmatprep.mubr.f32.mxu0 0.0
    %476 = vmatmul.mubr.f32.gmra.mrb[0].mxu0 %v409
    %v477 = vpop.f32.mrb[0].mxu0
    %v478 = vadd.f32 0.0, %v477
    %v479 = vpop.f32.mrb[0].mxu0
    %480 = vdwg.mxu0
    %vm481 = vcmask 390144
    %v482 = vsel %vm481, %v406, 0.0
    %483 = vadd.xlane.f32.xlu0 %v482
    %v484 = vpop.xlane.xlu0 %483
    %v485 = vmax.f32 %v484, 1e-09
    %v486 = vrcp.pop %v485
    %v487 = vmul.f32 %v478, %v486
    %v488 = vld [vmem:[#allocation9] sm:$0xff]
    %v489 = vld [vmem:[#allocation9 + $0x8] sm:$0xff]
    %v490 = vld [vmem:[#allocation9 + $0x10] sm:$0xff]
    %v491 = vld [vmem:[#allocation9 + $0x18] sm:$0xff]
    %v492 = vld [vmem:[#allocation9 + $0x20] sm:$0xff]
    %v493 = vld [vmem:[#allocation9 + $0x28] sm:$0xff]
    %v494 = vld [vmem:[#allocation9 + $0x30] sm:$0xff]
    %v495 = vld [vmem:[#allocation9 + $0x38] sm:$0xff]
    %v496 = vld [vmem:[#allocation9 + $0x40] sm:$0xff]
    %v497 = vld [vmem:[#allocation9 + $0x48] sm:$0xff]
    %v498 = vld [vmem:[#allocation9 + $0x50] sm:$0xff]
    %v499 = vld [vmem:[#allocation9 + $0x58] sm:$0xff]
    %v500 = vld [vmem:[#allocation9 + $0x60] sm:$0xff]
    %v501 = vld [vmem:[#allocation9 + $0x68] sm:$0xff]
    %v502 = vld [vmem:[#allocation9 + $0x70] sm:$0xff]
    %v503 = vld [vmem:[#allocation9 + $0x78] sm:$0xff]
    %v504 = vld [vmem:[#allocation9 + $0x80] sm:$0xff]
    %v505 = vld [vmem:[#allocation9 + $0x88] sm:$0xff]
    %v506 = vld [vmem:[#allocation9 + $0x90] sm:$0xff]
    %v507 = vld [vmem:[#allocation9 + $0x98] sm:$0xff]
    %v508 = vld [vmem:[#allocation9 + $0xa0] sm:$0xff]
    %v509 = vld [vmem:[#allocation9 + $0xa8] sm:$0xff]
    %v510 = vld [vmem:[#allocation9 + $0xb0] sm:$0xff]
    %v511 = vld [vmem:[#allocation9 + $0xb8] sm:$0xff]
    %v512 = vld [vmem:[#allocation9 + $0xc0] sm:$0xff]
    %v513 = vld [vmem:[#allocation9 + $0xc8] sm:$0xff]
    %v514 = vld [vmem:[#allocation9 + $0xd0] sm:$0xff]
    %v515 = vld [vmem:[#allocation9 + $0xd8] sm:$0xff]
    %v516 = vld [vmem:[#allocation9 + $0xe0] sm:$0xff]
    %v517 = vld [vmem:[#allocation9 + $0xe8] sm:$0xff]
    %v518 = vld [vmem:[#allocation9 + $0xf0] sm:$0xff]
    %v519 = vld [vmem:[#allocation9 + $0xf8] sm:$0xff]
    %v520 = vld [vmem:[%s6] sm:$0x3]
    %v522 = vlaneseq
    %v523 = vshrl.u32 %v522, 7
    %v524 = vsub.s32 0, %v523
    %v525 = vrot.slane %v520, %v524
    %v526 = vlaneseq
    %v527 = vshrl.u32 %v526, 7
    %v528 = vsub.s32 1, %v527
    %v529 = vrot.slane %v520, %v528
    %532 = vmatprep.subr.mxu0 %v489
    %533 = vmatpush1.msra.mxu0 %v488
    %534 = vmatprep.subr.mxu0 %v491
    %535 = vmatpush1.msra.mxu0 %v490
    %536 = vmatprep.subr.mxu0 %v493
    %537 = vmatpush1.msra.mxu0 %v492
    %538 = vmatprep.subr.mxu0 %v495
    %539 = vmatpush1.msra.mxu0 %v494
    %540 = vmatprep.subr.mxu0 %v497
    %541 = vmatpush1.msra.mxu0 %v496
    %542 = vmatprep.subr.mxu0 %v499
    %543 = vmatpush1.msra.mxu0 %v498
    %544 = vmatprep.subr.mxu0 %v501
    %545 = vmatpush1.msra.mxu0 %v500
    %546 = vmatprep.subr.mxu0 %v503
    %547 = vmatpush1.msra.mxu0 %v502
    %548 = vmatprep.subr.mxu0 %v505
    %549 = vmatpush1.msra.mxu0 %v504
    %550 = vmatprep.subr.mxu0 %v507
    %551 = vmatpush1.msra.mxu0 %v506
    %552 = vmatprep.subr.mxu0 %v509
    %553 = vmatpush1.msra.mxu0 %v508
    %554 = vmatprep.subr.mxu0 %v511
    %555 = vmatpush1.msra.mxu0 %v510
    %556 = vmatprep.subr.mxu0 %v513
    %557 = vmatpush1.msra.mxu0 %v512
    %558 = vmatprep.subr.mxu0 %v515
    %559 = vmatpush1.msra.mxu0 %v514
    %560 = vmatprep.subr.mxu0 %v517
    %561 = vmatpush1.msra.mxu0 %v516
    %562 = vmatprep.subr.mxu0 %v519
    %563 = vmatpush1.msra.mxu0 %v518
    %564 = vmatprep.subr.mxu0 0.0
    %565 = vmatpush1.msra.mxu0 0.0
    %566 = vmatprep.subr.mxu0 0.0
    %567 = vmatpush1.msra.mxu0 0.0
    %568 = vmatprep.subr.mxu0 0.0
    %569 = vmatpush1.msra.mxu0 0.0
    %570 = vmatprep.subr.mxu0 0.0
    %571 = vmatpush1.msra.mxu0 0.0
    %572 = vmatprep.subr.mxu0 0.0
    %573 = vmatpush1.msra.mxu0 0.0
    %574 = vmatprep.subr.mxu0 0.0
    %575 = vmatpush1.msra.mxu0 0.0
    %576 = vmatprep.subr.mxu0 0.0
    %577 = vmatpush1.msra.mxu0 0.0
    %578 = vmatprep.subr.mxu0 0.0
    %579 = vmatpush1.msra.mxu0 0.0
    %580 = vmatprep.subr.mxu0 0.0
    %581 = vmatpush1.msra.mxu0 0.0
    %582 = vmatprep.subr.mxu0 0.0
    %583 = vmatpush1.msra.mxu0 0.0
    %584 = vmatprep.subr.mxu0 0.0
    %585 = vmatpush1.msra.mxu0 0.0
    %586 = vmatprep.subr.mxu0 0.0
    %587 = vmatpush1.msra.mxu0 0.0
    %588 = vmatprep.subr.mxu0 0.0
    %589 = vmatpush1.msra.mxu0 0.0
    %590 = vmatprep.subr.mxu0 0.0
    %591 = vmatpush1.msra.mxu0 0.0
    %592 = vmatprep.subr.mxu0 0.0
    %593 = vmatpush1.msra.mxu0 0.0
    %594 = vmatprep.subr.mxu0 0.0
    %595 = vmatpush1.msra.mxu0 0.0
    %596 = vmatprep.mubr.f32.mxu0 0.0
    %597 = vmatmul.mubr.f32.gmra.mrb[0].mxu0 %v487
    %v598 = vpop.f32.mrb[0].mxu0
    %v599 = vadd.f32 %v525, %v598
    %v600 = vpop.f32.mrb[0].mxu0
    %v601 = vadd.f32 %v529, %v600
    %602 = vdwg.mxu0
    %603 = vst [vmem:[#allocation13] sm:$0x3] %v599
    %604 = vst [vmem:[#allocation15] sm:$0x3] %v601
    %v605 = vmul.f32 %v601, %v601
    %vm606 = vcmask 1045504
    %v607 = vsel %vm606, %v605, 0.0
    %608 = vadd.xlane.f32.xlu0 %v607
    %v609 = vpop.xlane.xlu0 %608
    %v610 = vmax.f32 %v609, 1e-24
    %v611 = vrsqrt.pop %v610
    %v612 = vmul.f32 %v601, %v611
    %v614 = vrot.slane %v612, 2
    %616 = vmatprep.subr.mxu0 0.0
    %617 = vmatpush1.xpose.msra.mxu0 %v614
    %618 = vmatprep.subr.mxu0 0.0
    %619 = vmatpush1.xpose.msra.mxu0 0.0
    %620 = vmatprep.subr.mxu0 0.0
    %621 = vmatpush1.xpose.msra.mxu0 0.0
    %622 = vmatprep.subr.mxu0 0.0
    %623 = vmatpush1.xpose.msra.mxu0 0.0
    %624 = vmatprep.subr.mxu0 0.0
    %625 = vmatpush1.xpose.msra.mxu0 0.0
    %626 = vmatprep.subr.mxu0 0.0
    %627 = vmatpush1.xpose.msra.mxu0 0.0
    %628 = vmatprep.subr.mxu0 0.0
    %629 = vmatpush1.xpose.msra.mxu0 0.0
    %630 = vmatprep.subr.mxu0 0.0
    %631 = vmatpush1.xpose.msra.mxu0 0.0
    %632 = vmatprep.subr.mxu0 0.0
    %633 = vmatpush1.xpose.msra.mxu0 0.0
    %634 = vmatprep.subr.mxu0 0.0
    %635 = vmatpush1.xpose.msra.mxu0 0.0
    %636 = vmatprep.subr.mxu0 0.0
    %637 = vmatpush1.xpose.msra.mxu0 0.0
    %638 = vmatprep.subr.mxu0 0.0
    %639 = vmatpush1.xpose.msra.mxu0 0.0
    %640 = vmatprep.subr.mxu0 0.0
    %641 = vmatpush1.xpose.msra.mxu0 0.0
    %642 = vmatprep.subr.mxu0 0.0
    %643 = vmatpush1.xpose.msra.mxu0 0.0
    %644 = vmatprep.subr.mxu0 0.0
    %645 = vmatpush1.xpose.msra.mxu0 0.0
    %646 = vmatprep.subr.mxu0 0.0
    %647 = vmatpush1.xpose.msra.mxu0 0.0
    %648 = vmatprep.subr.mxu0 0.0
    %649 = vmatpush1.xpose.msra.mxu0 0.0
    %650 = vmatprep.subr.mxu0 0.0
    %651 = vmatpush1.xpose.msra.mxu0 0.0
    %652 = vmatprep.subr.mxu0 0.0
    %653 = vmatpush1.xpose.msra.mxu0 0.0
    %654 = vmatprep.subr.mxu0 0.0
    %655 = vmatpush1.xpose.msra.mxu0 0.0
    %656 = vmatprep.subr.mxu0 0.0
    %657 = vmatpush1.xpose.msra.mxu0 0.0
    %658 = vmatprep.subr.mxu0 0.0
    %659 = vmatpush1.xpose.msra.mxu0 0.0
    %660 = vmatprep.subr.mxu0 0.0
    %661 = vmatpush1.xpose.msra.mxu0 0.0
    %662 = vmatprep.subr.mxu0 0.0
    %663 = vmatpush1.xpose.msra.mxu0 0.0
    %664 = vmatprep.subr.mxu0 0.0
    %665 = vmatpush1.xpose.msra.mxu0 0.0
    %666 = vmatprep.subr.mxu0 0.0
    %667 = vmatpush1.xpose.msra.mxu0 0.0
    %668 = vmatprep.subr.mxu0 0.0
    %669 = vmatpush1.xpose.msra.mxu0 0.0
    %670 = vmatprep.subr.mxu0 0.0
    %671 = vmatpush1.xpose.msra.mxu0 0.0
    %672 = vmatprep.subr.mxu0 0.0
    %673 = vmatpush1.xpose.msra.mxu0 0.0
    %674 = vmatprep.subr.mxu0 0.0
    %675 = vmatpush1.xpose.msra.mxu0 0.0
    %676 = vmatprep.subr.mxu0 0.0
    %677 = vmatpush1.xpose.msra.mxu0 0.0
    %678 = vmatprep.subr.mxu0 0.0
    %679 = vmatpush1.xpose.msra.mxu0 0.0
    %680 = vmatprep.mubr.f32.mxu0 0.0
    %681 = vmatmul.mubr.f32.gmra.mrb[0].mxu0 %v612
    %v682 = vpop.f32.mrb[0].mxu0
    %v683 = vadd.f32 0.0, %v682
    %v684 = vpop.f32.mrb[0].mxu0
    %685 = vdwg.mxu0
    %v686 = vmul.f32 %v683, 14.285714
    %vm687 = vcmask 25600
    %v688 = vsel %vm687, %v686, -inf
    %689 = vmax.xlane.f32.xlu0 %v688
    %v690 = vpop.xlane.xlu0 %689
    %v691 = vsub.f32 %v686, %v690
    %v692 = vmul.f32 %v691, 1.442695
    %v693 = vpow.pop %v692
    %v694 = vsel %vm687, %v693, 0.0
    %695 = vadd.xlane.f32.xlu0 %v694
    %v696 = vpop.xlane.xlu0 %695
    %v697 = vlog2.pop %v696
    %v698 = vmul.f32 %v697, 0.6931472
    %v699 = vadd.f32 %v690, %v698
    %v700 = vsub.f32 %v686, %v699
    %v701 = vsel %vm687, %v700, 0.0
    %702 = vadd.xlane.f32.xlu0 %v701
    %v703 = vpop.xlane.xlu0 %702
    %v704 = vrot.slane %v703, 4
    %v705 = vadd.f32 %v703, %v704
    %v706 = vrot.slane %v705, 2
    %v707 = vadd.f32 %v705, %v706
    %v708 = vrot.slane %v707, 1
    %v709 = vadd.f32 %v707, %v708
    %s710 = vtos %v709
    %s711 = ssub.f32 0.0, %s710
    %v712 = vrcp.pop 8.0
    %s713 = vtos %v712
    %s714 = smul.f32 %s711, %s713
    %s715 = smul.f32 %s714, 0.8
    %716 = vst [vmem:[#allocation2] sm:$0x3] %v601
    %v717 = vld [vmem:[%s7] sm:$0x3]
    %718 = vst [vmem:[#allocation2 + $0x2] sm:$0x3] %v717
    %v719 = vld [vmem:[#allocation2] sm:$0xf]
    %v720 = vld [vmem:[#allocation10] sm:$0xff]
    %v721 = vld [vmem:[#allocation10 + $0x8] sm:$0xff]
    %v722 = vld [vmem:[#allocation10 + $0x10] sm:$0xff]
    %v723 = vld [vmem:[#allocation10 + $0x18] sm:$0xff]
    %v724 = vld [vmem:[#allocation10 + $0x20] sm:$0xff]
    %v725 = vld [vmem:[#allocation10 + $0x28] sm:$0xff]
    %v726 = vld [vmem:[#allocation10 + $0x30] sm:$0xff]
    %v727 = vld [vmem:[#allocation10 + $0x38] sm:$0xff]
    %v728 = vld [vmem:[#allocation10 + $0x40] sm:$0xff]
    %v729 = vld [vmem:[#allocation10 + $0x48] sm:$0xff]
    %v730 = vld [vmem:[#allocation10 + $0x50] sm:$0xff]
    %v731 = vld [vmem:[#allocation10 + $0x58] sm:$0xff]
    %v732 = vld [vmem:[#allocation10 + $0x60] sm:$0xff]
    %v733 = vld [vmem:[#allocation10 + $0x68] sm:$0xff]
    %v734 = vld [vmem:[#allocation10 + $0x70] sm:$0xff]
    %v735 = vld [vmem:[#allocation10 + $0x78] sm:$0xff]
    %v736 = vld [vmem:[%s9] sm:$0x1]
    %v738 = vlaneseq
    %v739 = vshrl.u32 %v738, 7
    %v740 = vsub.s32 0, %v739
    %v741 = vrot.slane %v736, %v740
    %743 = vmatprep.subr.mxu0 0.0
    %744 = vmatpush1.msra.mxu0 %v720
    %745 = vmatprep.subr.mxu0 0.0
    %746 = vmatpush1.msra.mxu0 %v721
    %747 = vmatprep.subr.mxu0 0.0
    %748 = vmatpush1.msra.mxu0 %v722
    %749 = vmatprep.subr.mxu0 0.0
    %750 = vmatpush1.msra.mxu0 %v723
    %751 = vmatprep.subr.mxu0 0.0
    %752 = vmatpush1.msra.mxu0 %v724
    %753 = vmatprep.subr.mxu0 0.0
    %754 = vmatpush1.msra.mxu0 %v725
    %755 = vmatprep.subr.mxu0 0.0
    %756 = vmatpush1.msra.mxu0 %v726
    %757 = vmatprep.subr.mxu0 0.0
    %758 = vmatpush1.msra.mxu0 %v727
    %759 = vmatprep.subr.mxu0 0.0
    %760 = vmatpush1.msra.mxu0 %v728
    %761 = vmatprep.subr.mxu0 0.0
    %762 = vmatpush1.msra.mxu0 %v729
    %763 = vmatprep.subr.mxu0 0.0
    %764 = vmatpush1.msra.mxu0 %v730
    %765 = vmatprep.subr.mxu0 0.0
    %766 = vmatpush1.msra.mxu0 %v731
    %767 = vmatprep.subr.mxu0 0.0
    %768 = vmatpush1.msra.mxu0 %v732
    %769 = vmatprep.subr.mxu0 0.0
    %770 = vmatpush1.msra.mxu0 %v733
    %771 = vmatprep.subr.mxu0 0.0
    %772 = vmatpush1.msra.mxu0 %v734
    %773 = vmatprep.subr.mxu0 0.0
    %774 = vmatpush1.msra.mxu0 %v735
    %775 = vmatprep.subr.mxu0 0.0
    %776 = vmatpush1.msra.mxu0 0.0
    %777 = vmatprep.subr.mxu0 0.0
    %778 = vmatpush1.msra.mxu0 0.0
    %779 = vmatprep.subr.mxu0 0.0
    %780 = vmatpush1.msra.mxu0 0.0
    %781 = vmatprep.subr.mxu0 0.0
    %782 = vmatpush1.msra.mxu0 0.0
    %783 = vmatprep.subr.mxu0 0.0
    %784 = vmatpush1.msra.mxu0 0.0
    %785 = vmatprep.subr.mxu0 0.0
    %786 = vmatpush1.msra.mxu0 0.0
    %787 = vmatprep.subr.mxu0 0.0
    %788 = vmatpush1.msra.mxu0 0.0
    %789 = vmatprep.subr.mxu0 0.0
    %790 = vmatpush1.msra.mxu0 0.0
    %791 = vmatprep.subr.mxu0 0.0
    %792 = vmatpush1.msra.mxu0 0.0
    %793 = vmatprep.subr.mxu0 0.0
    %794 = vmatpush1.msra.mxu0 0.0
    %795 = vmatprep.subr.mxu0 0.0
    %796 = vmatpush1.msra.mxu0 0.0
    %797 = vmatprep.subr.mxu0 0.0
    %798 = vmatpush1.msra.mxu0 0.0
    %799 = vmatprep.subr.mxu0 0.0
    %800 = vmatpush1.msra.mxu0 0.0
    %801 = vmatprep.subr.mxu0 0.0
    %802 = vmatpush1.msra.mxu0 0.0
    %803 = vmatprep.subr.mxu0 0.0
    %804 = vmatpush1.msra.mxu0 0.0
    %805 = vmatprep.subr.mxu0 0.0
    %806 = vmatpush1.msra.mxu0 0.0
    %807 = vmatprep.mubr.f32.mxu0 0.0
    %808 = vmatmul.mubr.f32.gmra.mrb[0].mxu0 %v719
    %v809 = vpop.f32.mrb[0].mxu0
    %v810 = vadd.f32 %v741, %v809
    %v811 = vpop.f32.mrb[0].mxu0
    %812 = vdwg.mxu0
    %813 = vst [vmem:[#allocation16] sm:$0x3] %v810
    %814 = vst [vmem:[#allocation18 - $0x2] sm:$0xc] %v810
    %v816 = vrot.slane %v810, 2
    %v818 = vsub.f32 %v810, %v816
    %v819 = vmul.f32 %v818, %v818
    %vm820 = vcmask 1041408
    %v821 = vsel %vm820, %v819, 0.0
    %822 = vadd.xlane.f32.xlu0 %v821
    %v823 = vpop.xlane.xlu0 %822
    %v824 = vrot.slane %v823, 4
    %v825 = vadd.f32 %v823, %v824
    %v826 = vrot.slane %v825, 2
    %v827 = vadd.f32 %v825, %v826
    %v828 = vrot.slane %v827, 1
    %v829 = vadd.f32 %v827, %v828
    %s830 = vtos %v829
    %v831 = vrcp.pop 6.0
    %s832 = vtos %v831
    %s833 = smul.f32 %s830, %s832
    %s834 = smul.f32 %s715, 0.3
    %s835 = smul.f32 %s833, 0.7
    %s836 = sadd.f32 %s834, %s835
    %s837 = scalar_lea.smem [#allocation19], 0
    %838 = sst [smem:[%s837]] %s836
    // Predicated region
    $region58: #{tpu_custom_call.1} parent=1 // pred_check
      _
    $region59: #{tpu_custom_call.1} parent=1 // pred_check_branch
      %840 = sbr.rel (0) target = $region61
    $region60: #{tpu_custom_call.1} parent=1 // pred_region
      %s842 = ssub.s32 256, 256
      %843 = vsyncadd [#allocation5], %s842
      %s844 = sshll.u32 [#allocation12], 4
      %s845 = int_to_ptr.vmem [resolvable:$true] %s844
      %850 = dma.vmem_to_hbm [thread:$0]  %s845, 256, %s10, [#allocation5], 128, 128, 8
    $region61: #{tpu_custom_call.1} parent=1 // pred_fallthru
      _
    // Predicated region
    $region62: #{tpu_custom_call.1} parent=1 // pred_check
      _
    $region63: #{tpu_custom_call.1} parent=1 // pred_check_branch
      %852 = sbr.rel (0) target = $region65
    $region64: #{tpu_custom_call.1} parent=1 // pred_region
      %s854 = ssub.s32 32, 32
      %855 = vsyncadd [#allocation14], %s854
      %s857 = sshll.u32 [#allocation13], 4
      %s858 = int_to_ptr.vmem [resolvable:$true] %s857
      %860 = dma.vmem_to_hbm [thread:$0]  %s858, 32, %s11, [#allocation14]
    $region65: #{tpu_custom_call.1} parent=1 // pred_fallthru
      _
    // Predicated region
    $region66: #{tpu_custom_call.1} parent=1 // pred_check
      _
    $region67: #{tpu_custom_call.1} parent=1 // pred_check_branch
      %862 = sbr.rel (0) target = $region69
    $region68: #{tpu_custom_call.1} parent=1 // pred_region
      %s864 = ssub.s32 32, 32
      %865 = vsyncadd [#allocation14], %s864
      %s867 = sshll.u32 [#allocation15], 4
      %s868 = int_to_ptr.vmem [resolvable:$true] %s867
      %870 = dma.vmem_to_hbm [thread:$0]  %s868, 32, %s12, [#allocation14]
    $region69: #{tpu_custom_call.1} parent=1 // pred_fallthru
      _
    // Predicated region
    $region70: #{tpu_custom_call.1} parent=1 // pred_check
      _
    $region71: #{tpu_custom_call.1} parent=1 // pred_check_branch
      %872 = sbr.rel (0) target = $region73
    $region72: #{tpu_custom_call.1} parent=1 // pred_region
      %s874 = ssub.s32 32, 32
      %875 = vsyncadd [#allocation17], %s874
      %s877 = sshll.u32 [#allocation16], 4
      %s878 = int_to_ptr.vmem [resolvable:$true] %s877
      %880 = dma.vmem_to_hbm [thread:$0]  %s878, 32, %s13, [#allocation17]
    $region73: #{tpu_custom_call.1} parent=1 // pred_fallthru
      _
    // Predicated region
    $region74: #{tpu_custom_call.1} parent=1 // pred_check
      _
    $region75: #{tpu_custom_call.1} parent=1 // pred_check_branch
      %882 = sbr.rel (0) target = $region77
    $region76: #{tpu_custom_call.1} parent=1 // pred_region
      %s884 = ssub.s32 32, 32
      %885 = vsyncadd [#allocation17], %s884
      %s887 = sshll.u32 [#allocation18], 4
      %s888 = int_to_ptr.vmem [resolvable:$true] %s887
      %890 = dma.vmem_to_hbm [thread:$0]  %s888, 32, %s14, [#allocation17]
    $region77: #{tpu_custom_call.1} parent=1 // pred_fallthru
      _
    // Predicated region
    $region78: #{tpu_custom_call.1} parent=1 // pred_check
      _
    $region79: #{tpu_custom_call.1} parent=1 // pred_check_branch
      %892 = sbr.rel (0) target = $region81
    $region80: #{tpu_custom_call.1} parent=1 // pred_region
      %s894 = ssub.s32 16, 16
      %895 = vsyncadd [#allocation6], %s894
      %898 = dma.smem_to_hbm [#allocation19], 16, %s15, [#allocation6]
    $region81: #{tpu_custom_call.1} parent=1 // pred_fallthru
      _
    // Predicated region
    $region82: #{tpu_custom_call.1} parent=1 // pred_check
      _
    $region83: #{tpu_custom_call.1} parent=1 // pred_check_branch
      %900 = sbr.rel (0) target = $region85
    $region84: #{tpu_custom_call.1} parent=1 // pred_region
      %901 = dma.done [#allocation5], 256
    $region85: #{tpu_custom_call.1} parent=1 // pred_fallthru
      _
    // Predicated region
    $region86: #{tpu_custom_call.1} parent=1 // pred_check
      _
    $region87: #{tpu_custom_call.1} parent=1 // pred_check_branch
      %903 = sbr.rel (0) target = $region89
    $region88: #{tpu_custom_call.1} parent=1 // pred_region
      %904 = dma.done [#allocation14], 32
    $region89: #{tpu_custom_call.1} parent=1 // pred_fallthru
      _
    // Predicated region
    $region90: #{tpu_custom_call.1} parent=1 // pred_check
      _
    $region91: #{tpu_custom_call.1} parent=1 // pred_check_branch
      %906 = sbr.rel (0) target = $region93
    $region92: #{tpu_custom_call.1} parent=1 // pred_region
      %907 = dma.done [#allocation14], 32
    $region93: #{tpu_custom_call.1} parent=1 // pred_fallthru
      _
    // Predicated region
    $region94: #{tpu_custom_call.1} parent=1 // pred_check
      _
    $region95: #{tpu_custom_call.1} parent=1 // pred_check_branch
      %909 = sbr.rel (0) target = $region97
    $region96: #{tpu_custom_call.1} parent=1 // pred_region
      %910 = dma.done [#allocation17], 32
    $region97: #{tpu_custom_call.1} parent=1 // pred_fallthru
      _
    // Predicated region
    $region98: #{tpu_custom_call.1} parent=1 // pred_check
      _
    $region99: #{tpu_custom_call.1} parent=1 // pred_check_branch
      %912 = sbr.rel (0) target = $region101
    $region100: #{tpu_custom_call.1} parent=1 // pred_region
      %913 = dma.done [#allocation17], 32
    $region101: #{tpu_custom_call.1} parent=1 // pred_fallthru
      _
    // Predicated region
    $region102: #{tpu_custom_call.1} parent=1 // pred_check
      _
    $region103: #{tpu_custom_call.1} parent=1 // pred_check_branch
      %915 = sbr.rel (0) target = $region105
    $region104: #{tpu_custom_call.1} parent=1 // pred_region
      %916 = dma.done [#allocation6], 16
    $region105: #{tpu_custom_call.1} parent=1 // pred_fallthru
      _
    %917 = sfence
    %918 = vsyncpa [#allocation4], 1
    %919 = vsyncpa [#allocation8], 1
    %920 = vsyncpa [#allocation11], 1
    %921 = vsyncpa [#allocation5], 1
    %922 = vsyncpa [#allocation14], 1
    %923 = vsyncpa [#allocation17], 1
    %924 = vsyncpa [#allocation6], 1

</llo_original>
